<compile_context>
chip_gen: v7x
topology: tpu7x:2x2x1
jax: 0.10.0
libtpu: 0.0.40
codegen_flags: <defaults>
</compile_context>

<pallas_src>
import functools

import jax
import jax.numpy as jnp
from jax import lax
from jax.experimental import pallas as pl
from jax.experimental.pallas import tpu as pltpu


_LANE = 128
_SUBLANE = 8


# ---------------------------------------------------------------------------
# Kernels
# ---------------------------------------------------------------------------
def _std_discrep_resident_kernel(x_ref, y_ref, out_ref):
    """Whole batch (N) resident per block; grid tiles the feature dim D."""
    x = x_ref[...]
    y = y_ref[...]
    if x.dtype != jnp.float32:
        x = x.astype(jnp.float32)
    if y.dtype != jnp.float32:
        y = y.astype(jnp.float32)
    n = y.shape[0]

    # Per-feature mean over the batch axis (two-pass: exact for constant cols).
    mean = jnp.sum(y, axis=0, keepdims=True) * (1.0 / n)
    centered = y - mean
    var = jnp.sum(centered * centered, axis=0, keepdims=True) * (1.0 / (n - 1))

    # 1 / max(sqrt(var), 1e-5)  ==  min(rsqrt(var), 1e5)   (rsqrt(0)=inf clamps)
    inv = jnp.minimum(lax.rsqrt(var), jnp.float32(1e5))

    # |x1 - y1| == |x - y| * inv per feature column.
    colsum = jnp.sum(jnp.abs(x - y), axis=0, keepdims=True)
    out_ref[...] = colsum * inv


def _std_discrep_stream_kernel(x_ref, y_ref, out_ref,
                               sum_y, sum_ysq, sum_abs, *, n_total):
    """Streaming-N variant: grid=(D tiles, N tiles), N axis last ('arbitrary')."""
    nk = pl.program_id(1)

    @pl.when(nk == 0)
    def _():
        sum_y[...] = jnp.zeros_like(sum_y)
        sum_ysq[...] = jnp.zeros_like(sum_ysq)
        sum_abs[...] = jnp.zeros_like(sum_abs)

    x = x_ref[...]
    y = y_ref[...]
    if x.dtype != jnp.float32:
        x = x.astype(jnp.float32)
    if y.dtype != jnp.float32:
        y = y.astype(jnp.float32)

    sum_y[...] += jnp.sum(y, axis=0, keepdims=True)
    sum_ysq[...] += jnp.sum(y * y, axis=0, keepdims=True)
    sum_abs[...] += jnp.sum(jnp.abs(x - y), axis=0, keepdims=True)

    @pl.when(nk == pl.num_programs(1) - 1)
    def _():
        n = jnp.float32(n_total)
        mean = sum_y[...] * (1.0 / n)
        var = (sum_ysq[...] - n * mean * mean) * (1.0 / (n - 1.0))
        var = jnp.maximum(var, 0.0)  # one-pass rounding can dip slightly below 0
        inv = jnp.minimum(lax.rsqrt(var), jnp.float32(1e5))
        out_ref[...] = sum_abs[...] * inv


# ---------------------------------------------------------------------------
# Tile selection (VMEM-aware, per TPU generation)
# ---------------------------------------------------------------------------
def _tile_d_candidates(D):
    cands = [d for d in range(_LANE, D + 1, _LANE) if D % d == 0]
    cands.sort(reverse=True)
    # D < 128 or not a multiple of 128: single full-width block (always legal).
    return cands or [D]


def _tile_n_candidates(N):
    return sorted((n for n in range(_SUBLANE, N + 1, _SUBLANE) if N % n == 0),
                  reverse=True)


def _vmem_budget():
    """Returns (tile budget bytes, vmem_limit_bytes, assume_two_tensorcores)."""
    cap = None
    try:
        cap = int(pltpu.get_tpu_info().vmem_capacity_bytes)
    except Exception:
        cap = None
    if cap is None or cap <= (64 << 20):
        # v7x-class (64 MiB VMEM, 2 TCs) or unknown: be conservative, leave
        # headroom for Mosaic internal scratch.
        return 36 << 20, 48 << 20, True
    # v5e / v6e: 128 MiB physical VMEM — raise the 16/32 MiB default limit.
    return 72 << 20, 96 << 20, False


def _resident_block_bytes(N, tile_d, itemsize):
    # 2 inputs x 2 pipeline buffers + ~3 f32-temporary blocks of headroom.
    return 2 * 2 * N * tile_d * itemsize + 3 * N * tile_d * 4


def _stream_block_bytes(tile_n, tile_d, itemsize):
    return (2 * 2 * tile_n * tile_d * itemsize
            + 3 * tile_n * tile_d * 4          # f32 temporaries
            + 3 * tile_d * 4                   # accumulator scratch
            + 2 * tile_d * 4)                  # double-buffered output row


def _choose_tiles(N, D, itemsize, budget, two_tc):
    """Returns ('resident', tile_d, None) or ('stream', tile_d, tile_n)."""
    d_cands = _tile_d_candidates(D)

    fitting = [td for td in d_cands
               if _resident_block_bytes(N, td, itemsize) <= budget]
    if fitting:
        if two_tc:
            # Prefer >= 2 feature tiles so both TensorCores get work.
            multi = [td for td in fitting if D // td >= 2]
            if multi:
                return "resident", max(multi), None
        return "resident", max(fitting), None

    # Resident-N block does not fit -> stream N in chunks (decouples tile_d
    # from N; keeps lane-wide, VMEM-friendly blocks at any N).
    n_cands = _tile_n_candidates(N)
    best = None
    for td in d_cands:
        for tn in n_cands:
            if _stream_block_bytes(tn, td, itemsize) <= budget:
                score = (tn * td, td)
                if best is None or score > best[0]:
                    best = (score, td, tn)
                break  # n_cands is descending: first fit is the largest tn
    if best is not None:
        return "stream", best[1], best[2]

    # Last resort: smallest feature tile, whole N resident (may spill).
    return "resident", min(d_cands), None


# ---------------------------------------------------------------------------
# Wrapper
# ---------------------------------------------------------------------------
def std_discrep_loss(x, y, *, tile_d=None, tile_n=None):
    """StdDiscrepLoss forward: mean(|x - y| / max(y.std(0, unbiased), 1e-5)).

    Inputs may be bf16 and should be fed straight through (do NOT pre-cast to
    f32 in the caller): the kernel is HBM-bandwidth bound and upcasts to f32
    internally for the statistics/accumulation.
    """
    assert x.shape == y.shape and x.ndim == 2
    N, D = x.shape
    assert N >= 2, "unbiased std requires N >= 2 (N=1 is NaN in PyTorch too)"

    itemsize = max(jnp.dtype(x.dtype).itemsize, jnp.dtype(y.dtype).itemsize)
    budget, vmem_limit, two_tc = _vmem_budget()

    if tile_d is None and tile_n is None:
        mode, td, tn = _choose_tiles(N, D, itemsize, budget, two_tc)
    else:
        td = tile_d if tile_d is not None else D
        tn = tile_n
        mode = "stream" if (tn is not None and tn < N) else "resident"

    assert D % td == 0
    grid_d = D // td

    cost = pl.CostEstimate(
        flops=int(6 * N * D),
        transcendentals=int(D),
        bytes_accessed=int(2 * N * D * itemsize + 4 * D),
    )

    if mode == "resident":
        col = pl.pallas_call(
            _std_discrep_resident_kernel,
            out_shape=jax.ShapeDtypeStruct((1, D), jnp.float32),
            grid=(grid_d,),
            in_specs=[
                pl.BlockSpec((N, td), lambda d: (0, d)),
                pl.BlockSpec((N, td), lambda d: (0, d)),
            ],
            out_specs=pl.BlockSpec((1, td), lambda d: (0, d)),
            compiler_params=pltpu.CompilerParams(
                dimension_semantics=("parallel",),
                vmem_limit_bytes=vmem_limit,
            ),
            cost_estimate=cost,
        )(x, y)
    else:
        assert N % tn == 0 and (tn % _SUBLANE == 0 or tn == N)
        grid_n = N // tn
        col = pl.pallas_call(
            functools.partial(_std_discrep_stream_kernel, n_total=N),
            out_shape=jax.ShapeDtypeStruct((1, D), jnp.float32),
            grid=(grid_d, grid_n),
            in_specs=[
                pl.BlockSpec((tn, td), lambda d, n: (n, d)),
                pl.BlockSpec((tn, td), lambda d, n: (n, d)),
            ],
            out_specs=pl.BlockSpec((1, td), lambda d, n: (0, d)),
            scratch_shapes=[
                pltpu.VMEM((1, td), jnp.float32),
                pltpu.VMEM((1, td), jnp.float32),
                pltpu.VMEM((1, td), jnp.float32),
            ],
            compiler_params=pltpu.CompilerParams(
                dimension_semantics=("parallel", "arbitrary"),
                vmem_limit_bytes=vmem_limit,
            ),
            cost_estimate=cost,
        )(x, y)

    # Tiny final reduction over D (D scalars) + global 1/(N*D) scale.
    return jnp.sum(col) * (1.0 / (N * D))


def _reference(x, y):
    # Pure-JAX reference mirroring the PyTorch module (unbiased std).
    xf = x.astype(jnp.float32)
    yf = y.astype(jnp.float32)
    mean = jnp.mean(yf, axis=0)
    std = jnp.std(yf, axis=0, ddof=1)
    denom = jnp.maximum(std, 1e-5)
    x1 = (xf - mean) / denom
    y1 = (yf - mean) / denom
    return jnp.mean(jnp.abs(x1 - y1))


if __name__ == "__main__":
    key = jax.random.PRNGKey(0)
    kx, ky = jax.random.split(key)
    N, D = 16, 256
    x = jax.random.normal(kx, (N, D), dtype=jnp.float32)
    y = jax.random.normal(ky, (N, D), dtype=jnp.float32) * 1.7 + 0.3

    ref = _reference(x, y)

    # 1) Default path (auto, VMEM-aware tile pick; resident-N).
    loss = jax.block_until_ready(std_discrep_loss(x, y))
    assert jnp.allclose(loss, ref, rtol=1e-5, atol=1e-5), (loss, ref)

    # 2) Multi-tile feature grid (grid_d=2) — exercises the "parallel" axis.
    loss_t = jax.block_until_ready(std_discrep_loss(x, y, tile_d=128))
    assert jnp.allclose(loss_t, ref, rtol=1e-5, atol=1e-5), (loss_t, ref)

    # 3) Streaming-N path (grid=(2, 2)) — the large-N accumulator variant.
    loss_s = jax.block_until_ready(std_discrep_loss(x, y, tile_d=128, tile_n=8))
    assert jnp.allclose(loss_s, ref, rtol=1e-4, atol=1e-4), (loss_s, ref)

    # 4) Near-constant column -> exercises the 1e-5 sentinel clamp (resident /
    #    two-pass stats path, which is exact for constant columns).
    y2 = y.at[:, 7].set(0.3)
    loss2 = jax.block_until_ready(std_discrep_loss(x, y2))
    ref2 = _reference(x, y2)
    assert jnp.allclose(loss2, ref2, rtol=1e-4, atol=1e-4), (loss2, ref2)

    # 5) bf16 inputs fed straight through (kernel upcasts for f32 statistics).
    xb = x.astype(jnp.bfloat16)
    yb = y.astype(jnp.bfloat16)
    loss_b = jax.block_until_ready(std_discrep_loss(xb, yb))
    ref_b = _reference(xb, yb)
    assert jnp.allclose(loss_b, ref_b, rtol=1e-4, atol=1e-4), (loss_b, ref_b)

    print("KERNEL_OK")
</pallas_src>

<mosaic_0001>
module attributes {stable_mosaic.version = 11 : i64} {
  func.func @_std_discrep_resident_kernel(%arg0: i32, %arg1: memref<16x128xf32, #tpu.memory_space<vmem>>, %arg2: memref<16x128xf32, #tpu.memory_space<vmem>>, %arg3: memref<1x128xf32, #tpu.memory_space<vmem>>) attributes {dimension_semantics = [#tpu.dimension_semantics<parallel>], iteration_bounds = array<i64: 2>, scalar_prefetch = 0 : i64, scratch_operands = 0 : i64, tpu.core_type = #tpu.core_type<tc>, window_params = [{transform_indices = @transform_0, window_bounds = array<i64: 16, 128>}, {transform_indices = @transform_1, window_bounds = array<i64: 16, 128>}, {transform_indices = @transform_2, window_bounds = array<i64: 1, 128>}]} {
    %c0 = arith.constant 0 : index
    %c0_0 = arith.constant 0 : index
    %0 = vector.load %arg1[%c0, %c0_0] : memref<16x128xf32, #tpu.memory_space<vmem>>, vector<16x128xf32>
    %c0_1 = arith.constant 0 : index
    %c0_2 = arith.constant 0 : index
    %1 = vector.load %arg2[%c0_1, %c0_2] : memref<16x128xf32, #tpu.memory_space<vmem>>, vector<16x128xf32>
    %cst = arith.constant dense<0.000000e+00> : vector<128xf32>
    %2 = vector.multi_reduction <add>, %1, %cst [0] : vector<16x128xf32> to vector<128xf32>
    %3 = vector.shape_cast %2 : vector<128xf32> to vector<1x128xf32>
    %cst_3 = arith.constant 6.250000e-02 : f32
    %4 = vector.broadcast %cst_3 : f32 to vector<1x128xf32>
    %5 = arith.mulf %3, %4 : vector<1x128xf32>
    %6 = vector.broadcast %5 : vector<1x128xf32> to vector<16x128xf32>
    %7 = arith.subf %1, %6 : vector<16x128xf32>
    %8 = arith.mulf %7, %7 : vector<16x128xf32>
    %cst_4 = arith.constant dense<0.000000e+00> : vector<128xf32>
    %9 = vector.multi_reduction <add>, %8, %cst_4 [0] : vector<16x128xf32> to vector<128xf32>
    %10 = vector.shape_cast %9 : vector<128xf32> to vector<1x128xf32>
    %cst_5 = arith.constant 0.0666666701 : f32
    %11 = vector.broadcast %cst_5 : f32 to vector<1x128xf32>
    %12 = arith.mulf %10, %11 : vector<1x128xf32>
    %13 = math.rsqrt %12 : vector<1x128xf32>
    %cst_6 = arith.constant 1.000000e+05 : f32
    %14 = vector.broadcast %cst_6 : f32 to vector<1x128xf32>
    %15 = arith.minimumf %13, %14 : vector<1x128xf32>
    %16 = arith.subf %0, %1 : vector<16x128xf32>
    %17 = math.absf %16 : vector<16x128xf32>
    %cst_7 = arith.constant dense<0.000000e+00> : vector<128xf32>
    %18 = vector.multi_reduction <add>, %17, %cst_7 [0] : vector<16x128xf32> to vector<128xf32>
    %19 = vector.shape_cast %18 : vector<128xf32> to vector<1x128xf32>
    %20 = arith.mulf %19, %15 : vector<1x128xf32>
    %c0_8 = arith.constant 0 : index
    %c0_9 = arith.constant 0 : index
    %21 = vector.load %arg3[%c0_8, %c0_9] : memref<1x128xf32, #tpu.memory_space<vmem>>, vector<1x128xf32>
    tpu.vector_store %arg3[%c0_8, %c0_9], %20 {strides = array<i32>} : memref<1x128xf32, #tpu.memory_space<vmem>>, vector<1x128xf32>,
    return
  }
  func.func @transform_0(%arg0: i32) -> (i32, i32) {
    %c0_i32 = arith.constant 0 : i32
    %c0_i32_0 = arith.constant 0 : i32
    return %c0_i32, %arg0 : i32, i32
  }
  func.func @transform_1(%arg0: i32) -> (i32, i32) {
    %c0_i32 = arith.constant 0 : i32
    %c0_i32_0 = arith.constant 0 : i32
    return %c0_i32, %arg0 : i32, i32
  }
  func.func @transform_2(%arg0: i32) -> (i32, i32) {
    %c0_i32 = arith.constant 0 : i32
    %c0_i32_0 = arith.constant 0 : i32
    return %c0_i32, %arg0 : i32, i32
  }
}

</mosaic_0001>

<llo_original>
// kernel: tpu_custom_call.1
$region0: #{tpu_custom_call.1}
  #allocation0 [shape = 'u32[]', space=smem, size = 0x4, offset = 0x4, fixed_abs, tag = 'smem constant byte address 0x4 - core index']
  #allocation1 [shape = 'u32[144,128]{1,0:T(1,128)}', space=vmem, size = 0x12000, scoped, tag = 'internal scratch']
  %s0 = inlined_call_operand.hbm [shape: f32[16,256], index: 0, kind: input, shape index: {}]
  %s1 = inlined_call_operand.hbm [shape: f32[16,256], index: 1, kind: input, shape index: {}]
  %s2 = inlined_call_operand.hbm [shape: f32[1,256], index: 2, kind: output, shape index: {}]
  %s3 = sld [smem:[#allocation0]]
  $region49: #{tpu_custom_call.1} parent=0
    _
  %s5 = ssub.s32 1, %s3
  %s6 = scalar_select 0, %s5, %s3
  $region1: #{tpu_custom_call.1} parent=0
    #allocation2 [shape = 'u8[16384]{0}', space=vmem, size = 0x4000, scoped, tag = 'input window, operand 0']
    #allocation3 [shape = 's32[2]{0}', space=sflag, size = 0x8, scoped, tag = 'scoped memory for tpu_custom_call.1']
    #allocation4 [shape = 's32[2]{0}', space=sflag, size = 0x8, scoped, tag = 'scoped memory for tpu_custom_call.1']
    #allocation5 [shape = 'u8[16384]{0}', space=vmem, size = 0x4000, scoped, tag = 'input window, operand 1']
    #allocation6 [shape = 's32[2]{0}', space=sflag, size = 0x8, scoped, tag = 'scoped memory for tpu_custom_call.1']
    #allocation7 [shape = 'u8[1024]{0}', space=vmem, size = 0x400, scoped, tag = 'output window, operand 0']
    %7 = vsyncpa [#allocation3], 0
    %s8 = scalar_lea.sflag [#allocation3], 1
    %9 = vsyncpa %s8, 0
    %10 = vsyncpa [#allocation6], 0
    %s11 = scalar_lea.sflag [#allocation6], 1
    %12 = vsyncpa %s11, 0
    %13 = vsyncpa [#allocation4], 0
    %s14 = scalar_lea.sflag [#allocation4], 1
    %15 = vsyncpa %s14, 0
    loop: start=0, step=1, limit=4
    $region2: #{tpu_custom_call.1} parent=1 // loop_pre_header
      _
    $region3: #{tpu_custom_call.1} parent=1 // loop_header
      %s17 = sphi 0, %s21
      %p18 = scmp.ge.s32.totalorder %s17, 4
      %s27 = sphi 0, %s29
      %s30 = sphi 0, %s27
      %s31 = sphi 0, %s30
      %s47 = sphi 0, %s31
      %s53 = sphi 0, %s55
      %s56 = sphi 0, %s53
      %s57 = sphi 0, %s56
      %s73 = sphi 0, %s57
      %s79 = sphi 0, %s81
      %s82 = sphi 0, %s79
      %s83 = sphi 0, %s82
      %s99 = sphi 0, %s83
    $region4: #{tpu_custom_call.1} parent=1 // loop_header_branch
      %20 = sbr.rel (%p18) target = $region8
    $region5: #{tpu_custom_call.1} parent=1 // loop_body
      %s22 = ssub.s32 %s17, 1
      %s23 = ssub.s32 %s17, 2
      %s24 = sadd.s32 %s17, 1
      %s25 = ssub.s32 %s17, %s24
      %p26 = scmp.eq.s32.totalorder %s25, 0
      %s28 = sadd.s32 %s27, 1
      %s29 = scalar_select %p26, %s27, %s28
      %p32 = pneg %p26
      %p33 = scmp.eq.s32.totalorder %s17, 1
      %p34 = por %p32, %p33
      %p35 = scmp.ne.s32.totalorder %s27, %s30
      %p36 = scmp.eq.s32.totalorder %s17, 0
      %p37 = por %p35, %p36
      %p38 = scmp.ne.s32.totalorder %s27, %s30
      %p39 = scmp.eq.s32.totalorder %s22, 1
      %p40 = por %p38, %p39
      %p41 = scmp.ne.s32.totalorder %s30, %s31
      %p42 = scmp.eq.s32.totalorder %s22, 0
      %p43 = por %p41, %p42
      %p44 = scmp.ne.s32.totalorder %s30, %s31
      %p45 = scmp.eq.s32.totalorder %s23, 1
      %p46 = por %p44, %p45
      %p48 = scmp.ne.s32.totalorder %s31, %s47
      %p49 = scmp.eq.s32.totalorder %s23, 0
      %p50 = por %p48, %p49
      %s51 = ssub.s32 %s17, %s24
      %p52 = scmp.eq.s32.totalorder %s51, 0
      %s54 = sadd.s32 %s53, 1
      %s55 = scalar_select %p52, %s53, %s54
      %p58 = pneg %p52
      %p59 = scmp.eq.s32.totalorder %s17, 1
      %p60 = por %p58, %p59
      %p61 = scmp.ne.s32.totalorder %s53, %s56
      %p62 = scmp.eq.s32.totalorder %s17, 0
      %p63 = por %p61, %p62
      %p64 = scmp.ne.s32.totalorder %s53, %s56
      %p65 = scmp.eq.s32.totalorder %s22, 1
      %p66 = por %p64, %p65
      %p67 = scmp.ne.s32.totalorder %s56, %s57
      %p68 = scmp.eq.s32.totalorder %s22, 0
      %p69 = por %p67, %p68
      %p70 = scmp.ne.s32.totalorder %s56, %s57
      %p71 = scmp.eq.s32.totalorder %s23, 1
      %p72 = por %p70, %p71
      %p74 = scmp.ne.s32.totalorder %s57, %s73
      %p75 = scmp.eq.s32.totalorder %s23, 0
      %p76 = por %p74, %p75
      %s77 = ssub.s32 %s17, %s24
      %p78 = scmp.eq.s32.totalorder %s77, 0
      %s80 = sadd.s32 %s79, 1
      %s81 = scalar_select %p78, %s79, %s80
      %p84 = pneg %p78
      %p85 = scmp.eq.s32.totalorder %s17, 1
      %p86 = por %p84, %p85
      %p87 = scmp.ne.s32.totalorder %s79, %s82
      %p88 = scmp.eq.s32.totalorder %s17, 0
      %p89 = por %p87, %p88
      %p90 = scmp.ne.s32.totalorder %s79, %s82
      %p91 = scmp.eq.s32.totalorder %s22, 1
      %p92 = por %p90, %p91
      %p93 = scmp.ne.s32.totalorder %s82, %s83
      %p94 = scmp.eq.s32.totalorder %s22, 0
      %p95 = por %p93, %p94
      %p96 = scmp.ne.s32.totalorder %s82, %s83
      %p97 = scmp.eq.s32.totalorder %s23, 1
      %p98 = por %p96, %p97
      %p100 = scmp.ne.s32.totalorder %s83, %s99
      %p101 = scmp.eq.s32.totalorder %s23, 0
      %p102 = por %p100, %p101
      %p103 = scmp.le.s32.totalorder 1, %s17
      %p104 = scmp.lt.s32.totalorder %s17, 3
      %p105 = pnand %p103, %p104
      %p106 = pneg %p105
      // Predicated region
      $region9: #{tpu_custom_call.1} parent=5 // pred_check
        _
      $region10: #{tpu_custom_call.1} parent=5 // pred_check_branch
        %108 = sbr.rel (%p105) target = $region12
      $region11: #{tpu_custom_call.1} parent=5 // pred_region
        %s109 = ssub.s32 %s17, 1
      $region12: #{tpu_custom_call.1} parent=5 // pred_fallthru
        _
      %p110 = scmp.lt.s32.totalorder %s17, 2
      // Predicated region
      $region13: #{tpu_custom_call.1} parent=5 // pred_check
        %p111 = pneg %p110
      $region14: #{tpu_custom_call.1} parent=5 // pred_check_branch
        %113 = sbr.rel (%p111) target = $region16
      $region15: #{tpu_custom_call.1} parent=5 // pred_region
        // Predicated region
        $region17: #{tpu_custom_call.1} parent=15 // pred_check
          %p114 = pneg %p37
        $region18: #{tpu_custom_call.1} parent=15 // pred_check_branch
          %116 = sbr.rel (%p114) target = $region20
        $region19: #{tpu_custom_call.1} parent=15 // pred_region
          %s117 = sand.u32 %s27, 1
          %s118 = scalar_lea.sflag [#allocation3], %s117
          %s119 = sand.u32 %s27, 1
          %s120 = smul.addr %s119, 16
          %s121 = scalar_lea.vmem [#allocation2], %s120
          %s123 = ssub.s32 256, 256
          %124 = vsyncadd %s118, %s123
          %s125 = smul.addr %s17, 128
          %s126 = scalar_lea.hbm %s0, %s125
          %s127 = sshll.u32 %s121, 4
          %s128 = int_to_ptr.vmem [resolvable:$true] %s127
          %133 = dma.hbm_to_vmem [thread:$0]  %s126, 256, %s128, %s118, 256, 128, 8
        $region20: #{tpu_custom_call.1} parent=15 // pred_fallthru
          _
        // Predicated region
        $region21: #{tpu_custom_call.1} parent=15 // pred_check
          %p134 = pneg %p63
        $region22: #{tpu_custom_call.1} parent=15 // pred_check_branch
          %136 = sbr.rel (%p134) target = $region24
        $region23: #{tpu_custom_call.1} parent=15 // pred_region
          %s137 = sand.u32 %s53, 1
          %s138 = scalar_lea.sflag [#allocation6], %s137
          %s139 = sand.u32 %s53, 1
          %s140 = smul.addr %s139, 16
          %s141 = scalar_lea.vmem [#allocation5], %s140
          %s143 = ssub.s32 256, 256
          %144 = vsyncadd %s138, %s143
          %s145 = smul.addr %s17, 128
          %s146 = scalar_lea.hbm %s1, %s145
          %s147 = sshll.u32 %s141, 4
          %s148 = int_to_ptr.vmem [resolvable:$true] %s147
          %153 = dma.hbm_to_vmem [thread:$0]  %s146, 256, %s148, %s138, 256, 128, 8
        $region24: #{tpu_custom_call.1} parent=15 // pred_fallthru
          _
      $region16: #{tpu_custom_call.1} parent=5 // pred_fallthru
        _
      %p154 = scmp.le.s32.totalorder 1, %s17
      %p155 = scmp.lt.s32.totalorder %s17, 3
      %p156 = pnand %p154, %p155
      %p157 = pneg %p156
      // Predicated region
      $region25: #{tpu_custom_call.1} parent=5 // pred_check
        _
      $region26: #{tpu_custom_call.1} parent=5 // pred_check_branch
        %159 = sbr.rel (%p156) target = $region28
      $region27: #{tpu_custom_call.1} parent=5 // pred_region
        %s160 = ssub.s32 %s17, 1
        %s161 = sand.u32 %s30, 1
        %s162 = scalar_lea.sflag [#allocation3], %s161
        %s163 = sand.u32 %s30, 1
        %s164 = smul.addr %s163, 16
        %s165 = scalar_lea.vmem [#allocation2], %s164
        // Predicated region
        $region29: #{tpu_custom_call.1} parent=27 // pred_check
          %p166 = pneg %p43
        $region30: #{tpu_custom_call.1} parent=27 // pred_check_branch
          %168 = sbr.rel (%p166) target = $region32
        $region31: #{tpu_custom_call.1} parent=27 // pred_region
          %169 = dma.done %s162, 256
        $region32: #{tpu_custom_call.1} parent=27 // pred_fallthru
          _
        %s170 = sand.u32 %s56, 1
        %s171 = scalar_lea.sflag [#allocation6], %s170
        %s172 = sand.u32 %s56, 1
        %s173 = smul.addr %s172, 16
        %s174 = scalar_lea.vmem [#allocation5], %s173
        // Predicated region
        $region33: #{tpu_custom_call.1} parent=27 // pred_check
          %p175 = pneg %p69
        $region34: #{tpu_custom_call.1} parent=27 // pred_check_branch
          %177 = sbr.rel (%p175) target = $region36
        $region35: #{tpu_custom_call.1} parent=27 // pred_region
          %178 = dma.done %s171, 256
        $region36: #{tpu_custom_call.1} parent=27 // pred_fallthru
          _
        %s179 = sand.u32 %s30, 1
        %s180 = scalar_lea.sflag [#allocation3], %s179
        %s181 = sand.u32 %s30, 1
        %s182 = smul.addr %s181, 16
        %s183 = scalar_lea.vmem [#allocation2], %s182
        %p184 = pneg %p43
        %p185 = pneg %p40
        %s186 = sand.u32 %s56, 1
        %s187 = scalar_lea.sflag [#allocation6], %s186
        %s188 = sand.u32 %s56, 1
        %s189 = smul.addr %s188, 16
        %s190 = scalar_lea.vmem [#allocation5], %s189
        %p191 = pneg %p69
        %p192 = pneg %p66
        %p193 = pneg %p95
        %p194 = pneg %p92
        %s195 = sand.u32 %s82, 1
        %s196 = scalar_lea.sflag [#allocation4], %s195
        %s197 = sand.u32 %s82, 1
        %s198 = scalar_lea.vmem [#allocation7], %s197
        %v199 = vld [vmem:[%s165] sm:$0xff]
        %v200 = vld [vmem:[%s165 + $0x8] sm:$0xff]
        %v201 = vld [vmem:[%s174] sm:$0xff]
        %v202 = vld [vmem:[%s174 + $0x8] sm:$0xff]
        %v203 = vadd.f32 %v201, %v202
        %v204 = vrot.slane %v203, 4
        %v205 = vadd.f32 %v203, %v204
        %v206 = vrot.slane %v205, 2
        %v207 = vadd.f32 %v205, %v206
        %v208 = vrot.slane %v207, 1
        %v209 = vadd.f32 %v207, %v208
        %v210 = vmul.f32 %v209, 0.0625
        %v211 = vsub.f32 %v201, %v210
        %v212 = vsub.f32 %v202, %v210
        %v213 = vmul.f32 %v211, %v211
        %v214 = vmul.f32 %v212, %v212
        %v215 = vadd.f32 %v213, %v214
        %v216 = vrot.slane %v215, 4
        %v217 = vadd.f32 %v215, %v216
        %v218 = vrot.slane %v217, 2
        %v219 = vadd.f32 %v217, %v218
        %v220 = vrot.slane %v219, 1
        %v221 = vadd.f32 %v219, %v220
        %v222 = vmul.f32 %v221, 0.06666667
        %v223 = vrsqrt.pop %v222
        %v224 = vmin.f32 %v223, 100000.0
        %v225 = vsub.f32 %v199, %v201
        %v226 = vsub.f32 %v200, %v202
        %v227 = vand.u32 2147483647, %v225
        %v228 = vand.u32 2147483647, %v226
        %v229 = vadd.f32 %v227, %v228
        %v230 = vrot.slane %v229, 4
        %v231 = vadd.f32 %v229, %v230
        %v232 = vrot.slane %v231, 2
        %v233 = vadd.f32 %v231, %v232
        %v234 = vrot.slane %v233, 1
        %v235 = vadd.f32 %v233, %v234
        %v236 = vmul.f32 %v235, %v224
        %237 = vst [vmem:[%s198] sm:$0x1] %v236
        %s238 = sand.u32 %s82, 1
        %s239 = scalar_lea.sflag [#allocation4], %s238
        %s240 = sand.u32 %s82, 1
        %s241 = scalar_lea.vmem [#allocation7], %s240
        // Predicated region
        $region37: #{tpu_custom_call.1} parent=27 // pred_check
          %p242 = pneg %p92
        $region38: #{tpu_custom_call.1} parent=27 // pred_check_branch
          %244 = sbr.rel (%p242) target = $region40
        $region39: #{tpu_custom_call.1} parent=27 // pred_region
          %s246 = ssub.s32 16, 16
          %247 = vsyncadd %s239, %s246
          %s248 = smul.addr %s22, 16
          %s249 = scalar_lea.hbm %s2, %s248
          %s251 = sshll.u32 %s241, 4
          %s252 = int_to_ptr.vmem [resolvable:$true] %s251
          %254 = dma.vmem_to_hbm [thread:$0]  %s252, 16, %s249, %s239
        $region40: #{tpu_custom_call.1} parent=27 // pred_fallthru
          _
      $region28: #{tpu_custom_call.1} parent=5 // pred_fallthru
        _
      %p255 = scmp.le.s32.totalorder 2, %s17
      // Predicated region
      $region41: #{tpu_custom_call.1} parent=5 // pred_check
        %p256 = pneg %p255
      $region42: #{tpu_custom_call.1} parent=5 // pred_check_branch
        %258 = sbr.rel (%p256) target = $region44
      $region43: #{tpu_custom_call.1} parent=5 // pred_region
        %s259 = ssub.s32 %s17, 2
        // Predicated region
        $region45: #{tpu_custom_call.1} parent=43 // pred_check
          %p260 = pneg %p98
        $region46: #{tpu_custom_call.1} parent=43 // pred_check_branch
          %262 = sbr.rel (%p260) target = $region48
        $region47: #{tpu_custom_call.1} parent=43 // pred_region
          %s263 = sand.u32 %s83, 1
          %s264 = scalar_lea.sflag [#allocation4], %s263
          %s265 = sand.u32 %s83, 1
          %s266 = scalar_lea.vmem [#allocation7], %s265
          %267 = dma.done %s264, 16
        $region48: #{tpu_custom_call.1} parent=43 // pred_fallthru
          _
      $region44: #{tpu_custom_call.1} parent=5 // pred_fallthru
        _
    $region6: #{tpu_custom_call.1} parent=1 // loop_footer
      %s21 = sadd.s32 1, %s17
    $region7: #{tpu_custom_call.1} parent=1 // loop_footer_branch
      %16 = sbr.rel target = $region3
    $region8: #{tpu_custom_call.1} parent=1 // loop_exit
      _
    %268 = vsyncpa [#allocation3], 1
    %s269 = scalar_lea.sflag [#allocation3], 1
    %270 = vsyncpa %s269, 1
    %271 = vsyncpa [#allocation6], 1
    %s272 = scalar_lea.sflag [#allocation6], 1
    %273 = vsyncpa %s272, 1
    %274 = vsyncpa [#allocation4], 1
    %s275 = scalar_lea.sflag [#allocation4], 1
    %276 = vsyncpa %s275, 1

</llo_original>
